<compile_context>
chip_gen: v5e
topology: v5e:2x2
jax: 0.10.0
libtpu: 0.0.40
codegen_flags: <defaults>
</compile_context>

<pallas_src>
import jax
import jax.numpy as jnp
from jax.experimental import pallas as pl
from jax.experimental.pallas import tpu as pltpu


# Tile sizing, in units of 128-lane groups along the flattened spatial axis.
_S_CAP = 512        # max 512 * 128 = 64K lanes per tile (keeps VMEM tiny)
_S_MIN = 128        # min ~16K lanes per tile (amortizes ~0.35us/step overhead)
_TARGET_STEPS = 4   # aim for >= ~4 grid steps: pipelining + feeds both v7x TCs


def _choose_sublane_tile(groups):
    """Pick the spatial tile size (in 128-lane groups) for `groups` total."""
    if groups <= _S_MIN:
        # Small image: one full-extent block (always a legal block dim).
        return groups
    s = -(-groups // _TARGET_STEPS)   # cdiv: ~TARGET_STEPS tiles
    s = -(-s // 8) * 8                # sublane dim must be a multiple of 8
    return max(_S_MIN, min(s, _S_CAP))


def _dehaze_kernel(x_ref, feat_ref, o_ref):
    """out = K * x - B + x  ==  x * (K + 1) - B, computed in f32.

    Works for both block layouts:
      4-D: x (1, C, S, 128), feat (1, C+1, S, 128)
      3-D: x (1, C, T),      feat (1, C+1, T)
    Channel is axis 1 in both; K is channel 0 of feat, B is channels 1..C.
    """
    x = x_ref[...].astype(jnp.float32)
    f = feat_ref[...].astype(jnp.float32)
    k = f[:, 0:1]   # (1, 1, ...): broadcasts over the channel axis
    b = f[:, 1:]    # (1, C, ...)
    o_ref[...] = (x * (k + 1.0) - b).astype(o_ref.dtype)


def dehazeformer_forward(x, feat, *, donate_x=False, sublane_tile=None):
    """DehazeFormer.forward:  out = K * x - B + x,  feat = concat([K, B], axis=1).

    x: [N, C, H, W], feat: [N, C+1, H, W] (same dtype). Returns [N, C, H, W].
    donate_x: set True only if the caller donates x's buffer (enables
      input_output_aliases={0: 0} to reuse x's HBM allocation for the output).
    sublane_tile: optional override of the spatial tile size (in 128-lane
      groups); mainly for testing the multi-tile path at small shapes.
    """
    N, C, H, W = x.shape
    assert feat.shape == (N, C + 1, H, W), (feat.shape, (N, C + 1, H, W))
    assert feat.dtype == x.dtype
    P = H * W

    if P % 128 == 0:
        # Preferred layout: [N, C, P//128, 128].  The channel axis sits above
        # the (sublane, lane) tile -> no 8-sublane padding of C=3/4, and all
        # stores are unmasked (8,128) tiles (free reshape for contiguous NCHW).
        Pt = P // 128
        S = sublane_tile if sublane_tile is not None else _choose_sublane_tile(Pt)
        S = min(S, Pt)
        x_r = x.reshape(N, C, Pt, 128)
        feat_r = feat.reshape(N, C + 1, Pt, 128)
        n_tiles = pl.cdiv(Pt, S)
        in_specs = [
            pl.BlockSpec((1, C, S, 128), lambda i, j: (i, 0, j, 0)),
            pl.BlockSpec((1, C + 1, S, 128), lambda i, j: (i, 0, j, 0)),
        ]
        out_spec = pl.BlockSpec((1, C, S, 128), lambda i, j: (i, 0, j, 0))
        out_shape = jax.ShapeDtypeStruct((N, C, Pt, 128), x.dtype)
    else:
        # Fallback for odd resolutions: lane-dense [N, C, P] layout.  The C
        # axis is sublane-padded to 8 rows here, but this path only triggers
        # for P % 128 != 0 (small / unusual image sizes).
        groups = pl.cdiv(P, 128)
        S = sublane_tile if sublane_tile is not None else _choose_sublane_tile(groups)
        if S >= groups:
            tile, n_tiles = P, 1        # full extent: legal for any P
        else:
            tile = S * 128              # lane tile must be a multiple of 128
            n_tiles = pl.cdiv(P, tile)
        x_r = x.reshape(N, C, P)
        feat_r = feat.reshape(N, C + 1, P)
        in_specs = [
            pl.BlockSpec((1, C, tile), lambda i, j: (i, 0, j)),
            pl.BlockSpec((1, C + 1, tile), lambda i, j: (i, 0, j)),
        ]
        out_spec = pl.BlockSpec((1, C, tile), lambda i, j: (i, 0, j))
        out_shape = jax.ShapeDtypeStruct((N, C, P), x.dtype)

    out = pl.pallas_call(
        _dehaze_kernel,
        out_shape=out_shape,
        grid=(N, n_tiles),
        in_specs=in_specs,
        out_specs=out_spec,
        compiler_params=pltpu.CompilerParams(
            # Both axes are independent -> megacore-shardable on v7x.
            dimension_semantics=("parallel", "parallel"),
            # Blocks are tiny with the 4-D layout; 32 MiB is safe on v5e/v6e
            # (128 MiB physical) and within v7x's 64 MiB physical VMEM.
            vmem_limit_bytes=32 * 1024 * 1024,
        ),
        input_output_aliases=({0: 0} if donate_x else {}),
    )(x_r, feat_r)

    return out.reshape(N, C, H, W)


# TODO(synk): the unused __init__ submodules (PatchEmbed, BasicLayer, SKFusion,
# RLN, WindowAttention, ...) are intentionally not implemented because
# forward(x, feat) never calls them.


def _ref(x, feat):
    K, B = feat[:, :1], feat[:, 1:]
    return K * x - B + x


if __name__ == "__main__":
    key = jax.random.PRNGKey(0)
    kx, kf = jax.random.split(key)

    # 1) Small shape implied by the module: in_chans=3 image, feat = 1 + 3 ch.
    #    P = 256 (multiple of 128) -> 4-D layout, single full-extent block.
    N, C, H, W = 2, 3, 16, 16
    x = jax.random.normal(kx, (N, C, H, W), dtype=jnp.float32)
    feat = jax.random.normal(kf, (N, C + 1, H, W), dtype=jnp.float32)
    out = jax.block_until_ready(dehazeformer_forward(x, feat))
    assert out.shape == (N, C, H, W)
    assert jnp.allclose(out, _ref(x, feat), atol=1e-5, rtol=1e-5), "mismatch (4-D path)"

    # 2) Exercise the tiled 4-D path (multi-step grid + partial trailing block)
    #    at a small size by overriding the tile: P = 1536 -> 12 lane-groups,
    #    tile of 8 groups -> grid (1, 2), last block masked.
    H2, W2 = 48, 32
    x2 = jax.random.normal(kx, (1, C, H2, W2), dtype=jnp.float32)
    feat2 = jax.random.normal(kf, (1, C + 1, H2, W2), dtype=jnp.float32)
    out2 = jax.block_until_ready(dehazeformer_forward(x2, feat2, sublane_tile=8))
    assert out2.shape == (1, C, H2, W2)
    assert jnp.allclose(out2, _ref(x2, feat2), atol=1e-5, rtol=1e-5), "mismatch (tiled 4-D)"

    # 3) Exercise the 3-D fallback (P = 500, not a multiple of 128).
    H3, W3 = 20, 25
    x3 = jax.random.normal(kx, (1, C, H3, W3), dtype=jnp.float32)
    feat3 = jax.random.normal(kf, (1, C + 1, H3, W3), dtype=jnp.float32)
    out3 = jax.block_until_ready(dehazeformer_forward(x3, feat3))
    assert out3.shape == (1, C, H3, W3)
    assert jnp.allclose(out3, _ref(x3, feat3), atol=1e-5, rtol=1e-5), "mismatch (3-D path)"

    # 4) bf16 inputs: f32 internal math keeps the (K + 1) contribution.
    xb = x.astype(jnp.bfloat16)
    fb = feat.astype(jnp.bfloat16)
    outb = jax.block_until_ready(dehazeformer_forward(xb, fb))
    refb = _ref(xb.astype(jnp.float32), fb.astype(jnp.float32))
    assert outb.dtype == jnp.bfloat16
    assert jnp.allclose(outb.astype(jnp.float32), refb, atol=3e-2, rtol=3e-2), "mismatch (bf16)"

    print("KERNEL_OK")
</pallas_src>

<mosaic_0001>
module attributes {stable_mosaic.version = 11 : i64} {
  func.func @_dehaze_kernel(%arg0: i32, %arg1: i32, %arg2: memref<1x3x2x128xf32, #tpu.memory_space<vmem>>, %arg3: memref<1x4x2x128xf32, #tpu.memory_space<vmem>>, %arg4: memref<1x3x2x128xf32, #tpu.memory_space<vmem>>) attributes {dimension_semantics = [#tpu.dimension_semantics<parallel>, #tpu.dimension_semantics<parallel>], iteration_bounds = array<i64: 2, 1>, scalar_prefetch = 0 : i64, scratch_operands = 0 : i64, tpu.core_type = #tpu.core_type<tc>, window_params = [{transform_indices = @transform_0, window_bounds = array<i64: 1, 3, 2, 128>}, {transform_indices = @transform_1, window_bounds = array<i64: 1, 4, 2, 128>}, {transform_indices = @transform_2, window_bounds = array<i64: 1, 3, 2, 128>}]} {
    %c0 = arith.constant 0 : index
    %c0_0 = arith.constant 0 : index
    %c0_1 = arith.constant 0 : index
    %c0_2 = arith.constant 0 : index
    %0 = vector.load %arg2[%c0, %c0_0, %c0_1, %c0_2] : memref<1x3x2x128xf32, #tpu.memory_space<vmem>>, vector<1x3x2x128xf32>
    %c0_3 = arith.constant 0 : index
    %c0_4 = arith.constant 0 : index
    %c0_5 = arith.constant 0 : index
    %c0_6 = arith.constant 0 : index
    %1 = vector.load %arg3[%c0_3, %c0_4, %c0_5, %c0_6] : memref<1x4x2x128xf32, #tpu.memory_space<vmem>>, vector<1x4x2x128xf32>
    %2 = vector.extract_strided_slice %1 {offsets = [0, 0, 0, 0], sizes = [1, 1, 2, 128], strides = [1, 1, 1, 1]} : vector<1x4x2x128xf32> to vector<1x1x2x128xf32>
    %3 = vector.extract_strided_slice %1 {offsets = [0, 1, 0, 0], sizes = [1, 3, 2, 128], strides = [1, 1, 1, 1]} : vector<1x4x2x128xf32> to vector<1x3x2x128xf32>
    %cst = arith.constant 1.000000e+00 : f32
    %4 = vector.broadcast %cst : f32 to vector<1x1x2x128xf32>
    %5 = arith.addf %2, %4 : vector<1x1x2x128xf32>
    %6 = vector.broadcast %5 : vector<1x1x2x128xf32> to vector<1x3x2x128xf32>
    %7 = arith.mulf %0, %6 : vector<1x3x2x128xf32>
    %8 = arith.subf %7, %3 : vector<1x3x2x128xf32>
    %c0_7 = arith.constant 0 : index
    %c0_8 = arith.constant 0 : index
    %c0_9 = arith.constant 0 : index
    %c0_10 = arith.constant 0 : index
    %9 = vector.load %arg4[%c0_7, %c0_8, %c0_9, %c0_10] : memref<1x3x2x128xf32, #tpu.memory_space<vmem>>, vector<1x3x2x128xf32>
    tpu.vector_store %arg4[%c0_7, %c0_8, %c0_9, %c0_10], %8 {strides = array<i32>} : memref<1x3x2x128xf32, #tpu.memory_space<vmem>>, vector<1x3x2x128xf32>,
    return
  }
  func.func @transform_0(%arg0: i32, %arg1: i32) -> (i32, i32, i32, i32) {
    %c0_i32 = arith.constant 0 : i32
    %c0_i32_0 = arith.constant 0 : i32
    %c0_i32_1 = arith.constant 0 : i32
    return %arg0, %c0_i32, %arg1, %c0_i32_0 : i32, i32, i32, i32
  }
  func.func @transform_1(%arg0: i32, %arg1: i32) -> (i32, i32, i32, i32) {
    %c0_i32 = arith.constant 0 : i32
    %c0_i32_0 = arith.constant 0 : i32
    %c0_i32_1 = arith.constant 0 : i32
    return %arg0, %c0_i32, %arg1, %c0_i32_0 : i32, i32, i32, i32
  }
  func.func @transform_2(%arg0: i32, %arg1: i32) -> (i32, i32, i32, i32) {
    %c0_i32 = arith.constant 0 : i32
    %c0_i32_0 = arith.constant 0 : i32
    %c0_i32_1 = arith.constant 0 : i32
    return %arg0, %c0_i32, %arg1, %c0_i32_0 : i32, i32, i32, i32
  }
}

</mosaic_0001>

<llo_original>
// kernel: tpu_custom_call.1
$region0: #{tpu_custom_call.1}
  #allocation0 [shape = 'u32[]', space=smem, size = 0x4, offset = 0x4, fixed_abs, tag = 'smem constant byte address 0x4 - core index']
  #allocation1 [shape = 'u32[72,128]{1,0:T(1,128)}', space=vmem, size = 0x9000, scoped, tag = 'internal scratch']
  %s0 = inlined_call_operand.hbm [shape: f32[2,3,2,128], index: 0, kind: input, shape index: {}]
  %s1 = inlined_call_operand.hbm [shape: f32[2,4,2,128], index: 1, kind: input, shape index: {}]
  %s2 = inlined_call_operand.hbm [shape: f32[2,3,2,128], index: 2, kind: output, shape index: {}]
  %s3 = sld [smem:[#allocation0]]
  $region49: #{tpu_custom_call.1} parent=0
    _
  %s5 = ssub.s32 1, %s3
  %s6 = scalar_select 0, %s5, %s3
  $region1: #{tpu_custom_call.1} parent=0
    #allocation2 [shape = 'u8[6144]{0}', space=vmem, size = 0x1800, scoped, tag = 'input window, operand 0']
    #allocation3 [shape = 's32[2]{0}', space=sflag, size = 0x8, scoped, tag = 'scoped memory for tpu_custom_call.1']
    #allocation4 [shape = 's32[2]{0}', space=sflag, size = 0x8, scoped, tag = 'scoped memory for tpu_custom_call.1']
    #allocation5 [shape = 'u8[8192]{0}', space=vmem, size = 0x2000, scoped, tag = 'input window, operand 1']
    #allocation6 [shape = 's32[2]{0}', space=sflag, size = 0x8, scoped, tag = 'scoped memory for tpu_custom_call.1']
    #allocation7 [shape = 'u8[6144]{0}', space=vmem, size = 0x1800, scoped, tag = 'output window, operand 0']
    %7 = vsyncpa [#allocation3], 0
    %s8 = scalar_lea.sflag [#allocation3], 1
    %9 = vsyncpa %s8, 0
    %10 = vsyncpa [#allocation6], 0
    %s11 = scalar_lea.sflag [#allocation6], 1
    %12 = vsyncpa %s11, 0
    %13 = vsyncpa [#allocation4], 0
    %s14 = scalar_lea.sflag [#allocation4], 1
    %15 = vsyncpa %s14, 0
    loop: start=0, step=1, limit=4
    $region2: #{tpu_custom_call.1} parent=1 // loop_pre_header
      _
    $region3: #{tpu_custom_call.1} parent=1 // loop_header
      %s17 = sphi 0, %s21
      %p18 = scmp.ge.s32.totalorder %s17, 4
      %s24 = sphi 0, %s36
      %s25 = sphi 0, %s32
      %s26 = sphi 0, %s24
      %s27 = sphi 0, %s25
      %s28 = sphi 0, %s26
      %s29 = sphi 0, %s27
      %s41 = sphi 0, %s43
      %s44 = sphi 0, %s41
      %s45 = sphi 0, %s44
      %s61 = sphi 0, %s45
      %s69 = sphi 0, %s71
      %s72 = sphi 0, %s69
      %s73 = sphi 0, %s72
      %s89 = sphi 0, %s73
      %s97 = sphi 0, %s99
      %s100 = sphi 0, %s97
      %s101 = sphi 0, %s100
      %s117 = sphi 0, %s101
    $region4: #{tpu_custom_call.1} parent=1 // loop_header_branch
      %20 = sbr.rel (%p18) target = $region8
    $region5: #{tpu_custom_call.1} parent=1 // loop_body
      %s22 = ssub.s32 %s17, 1
      %s23 = ssub.s32 %s17, 2
      %s30 = sadd.s32 1, %s25
      %p31 = scmp.ge.s32.totalorder %s30, 1
      %s32 = scalar_select %p31, 0, %s30
      %s33 = sadd.s32 1, %s24
      %s34 = scalar_select %p31, %s33, %s24
      %p35 = scmp.ge.s32.totalorder %s34, 2
      %s36 = scalar_select %p35, 0, %s34
      %s37 = ssub.s32 %s24, %s36
      %s38 = ssub.s32 %s25, %s32
      %s39 = sor.u32 %s37, %s38
      %p40 = scmp.eq.s32.totalorder %s39, 0
      %s42 = sadd.s32 %s41, 1
      %s43 = scalar_select %p40, %s41, %s42
      %p46 = pneg %p40
      %p47 = scmp.eq.s32.totalorder %s17, 1
      %p48 = por %p46, %p47
      %p49 = scmp.ne.s32.totalorder %s41, %s44
      %p50 = scmp.eq.s32.totalorder %s17, 0
      %p51 = por %p49, %p50
      %p52 = scmp.ne.s32.totalorder %s41, %s44
      %p53 = scmp.eq.s32.totalorder %s22, 1
      %p54 = por %p52, %p53
      %p55 = scmp.ne.s32.totalorder %s44, %s45
      %p56 = scmp.eq.s32.totalorder %s22, 0
      %p57 = por %p55, %p56
      %p58 = scmp.ne.s32.totalorder %s44, %s45
      %p59 = scmp.eq.s32.totalorder %s23, 1
      %p60 = por %p58, %p59
      %p62 = scmp.ne.s32.totalorder %s45, %s61
      %p63 = scmp.eq.s32.totalorder %s23, 0
      %p64 = por %p62, %p63
      %s65 = ssub.s32 %s24, %s36
      %s66 = ssub.s32 %s25, %s32
      %s67 = sor.u32 %s65, %s66
      %p68 = scmp.eq.s32.totalorder %s67, 0
      %s70 = sadd.s32 %s69, 1
      %s71 = scalar_select %p68, %s69, %s70
      %p74 = pneg %p68
      %p75 = scmp.eq.s32.totalorder %s17, 1
      %p76 = por %p74, %p75
      %p77 = scmp.ne.s32.totalorder %s69, %s72
      %p78 = scmp.eq.s32.totalorder %s17, 0
      %p79 = por %p77, %p78
      %p80 = scmp.ne.s32.totalorder %s69, %s72
      %p81 = scmp.eq.s32.totalorder %s22, 1
      %p82 = por %p80, %p81
      %p83 = scmp.ne.s32.totalorder %s72, %s73
      %p84 = scmp.eq.s32.totalorder %s22, 0
      %p85 = por %p83, %p84
      %p86 = scmp.ne.s32.totalorder %s72, %s73
      %p87 = scmp.eq.s32.totalorder %s23, 1
      %p88 = por %p86, %p87
      %p90 = scmp.ne.s32.totalorder %s73, %s89
      %p91 = scmp.eq.s32.totalorder %s23, 0
      %p92 = por %p90, %p91
      %s93 = ssub.s32 %s24, %s36
      %s94 = ssub.s32 %s25, %s32
      %s95 = sor.u32 %s93, %s94
      %p96 = scmp.eq.s32.totalorder %s95, 0
      %s98 = sadd.s32 %s97, 1
      %s99 = scalar_select %p96, %s97, %s98
      %p102 = pneg %p96
      %p103 = scmp.eq.s32.totalorder %s17, 1
      %p104 = por %p102, %p103
      %p105 = scmp.ne.s32.totalorder %s97, %s100
      %p106 = scmp.eq.s32.totalorder %s17, 0
      %p107 = por %p105, %p106
      %p108 = scmp.ne.s32.totalorder %s97, %s100
      %p109 = scmp.eq.s32.totalorder %s22, 1
      %p110 = por %p108, %p109
      %p111 = scmp.ne.s32.totalorder %s100, %s101
      %p112 = scmp.eq.s32.totalorder %s22, 0
      %p113 = por %p111, %p112
      %p114 = scmp.ne.s32.totalorder %s100, %s101
      %p115 = scmp.eq.s32.totalorder %s23, 1
      %p116 = por %p114, %p115
      %p118 = scmp.ne.s32.totalorder %s101, %s117
      %p119 = scmp.eq.s32.totalorder %s23, 0
      %p120 = por %p118, %p119
      %p121 = scmp.le.s32.totalorder 1, %s17
      %p122 = scmp.lt.s32.totalorder %s17, 3
      %p123 = pnand %p121, %p122
      %p124 = pneg %p123
      // Predicated region
      $region9: #{tpu_custom_call.1} parent=5 // pred_check
        _
      $region10: #{tpu_custom_call.1} parent=5 // pred_check_branch
        %126 = sbr.rel (%p123) target = $region12
      $region11: #{tpu_custom_call.1} parent=5 // pred_region
        %s127 = ssub.s32 %s17, 1
      $region12: #{tpu_custom_call.1} parent=5 // pred_fallthru
        _
      %p128 = scmp.lt.s32.totalorder %s17, 2
      // Predicated region
      $region13: #{tpu_custom_call.1} parent=5 // pred_check
        %p129 = pneg %p128
      $region14: #{tpu_custom_call.1} parent=5 // pred_check_branch
        %131 = sbr.rel (%p129) target = $region16
      $region15: #{tpu_custom_call.1} parent=5 // pred_region
        // Predicated region
        $region17: #{tpu_custom_call.1} parent=15 // pred_check
          %p132 = pneg %p51
        $region18: #{tpu_custom_call.1} parent=15 // pred_check_branch
          %134 = sbr.rel (%p132) target = $region20
        $region19: #{tpu_custom_call.1} parent=15 // pred_region
          %s135 = sand.u32 %s41, 1
          %s136 = scalar_lea.sflag [#allocation3], %s135
          %s137 = sand.u32 %s41, 1
          %s138 = smul.addr %s137, 6
          %s139 = scalar_lea.vmem [#allocation2], %s138
          %141 = vsyncadd %s136, 0
          %s142 = smul.addr %s24, 3
          %s143 = sadd.s32 %s25, %s142
          %s144 = smul.addr %s143, 2
          %s145 = scalar_lea.hbm %s0, %s144
          %s146 = sshll.u32 %s145, 4
          %s147 = int_to_ptr.hbm [resolvable:$true] %s146
          %s148 = sshll.u32 %s139, 4
          %s149 = int_to_ptr.vmem [resolvable:$true] %s148
          %154 = dma.hbm_to_vmem [thread:$0]  %s147, 96, %s149, %s136, 32, 32, 2
        $region20: #{tpu_custom_call.1} parent=15 // pred_fallthru
          _
        // Predicated region
        $region21: #{tpu_custom_call.1} parent=15 // pred_check
          %p155 = pneg %p79
        $region22: #{tpu_custom_call.1} parent=15 // pred_check_branch
          %157 = sbr.rel (%p155) target = $region24
        $region23: #{tpu_custom_call.1} parent=15 // pred_region
          %s158 = sand.u32 %s69, 1
          %s159 = scalar_lea.sflag [#allocation6], %s158
          %s160 = sand.u32 %s69, 1
          %s161 = smul.addr %s160, 8
          %s162 = scalar_lea.vmem [#allocation5], %s161
          %164 = vsyncadd %s159, 0
          %s165 = smul.addr %s24, 4
          %s166 = sadd.s32 %s25, %s165
          %s167 = smul.addr %s166, 2
          %s168 = scalar_lea.hbm %s1, %s167
          %s169 = sshll.u32 %s168, 4
          %s170 = int_to_ptr.hbm [resolvable:$true] %s169
          %s171 = sshll.u32 %s162, 4
          %s172 = int_to_ptr.vmem [resolvable:$true] %s171
          %177 = dma.hbm_to_vmem [thread:$0]  %s170, 128, %s172, %s159, 32, 32, 2
        $region24: #{tpu_custom_call.1} parent=15 // pred_fallthru
          _
      $region16: #{tpu_custom_call.1} parent=5 // pred_fallthru
        _
      %p178 = scmp.le.s32.totalorder 1, %s17
      %p179 = scmp.lt.s32.totalorder %s17, 3
      %p180 = pnand %p178, %p179
      %p181 = pneg %p180
      // Predicated region
      $region25: #{tpu_custom_call.1} parent=5 // pred_check
        _
      $region26: #{tpu_custom_call.1} parent=5 // pred_check_branch
        %183 = sbr.rel (%p180) target = $region28
      $region27: #{tpu_custom_call.1} parent=5 // pred_region
        %s184 = ssub.s32 %s17, 1
        %s185 = sand.u32 %s44, 1
        %s186 = scalar_lea.sflag [#allocation3], %s185
        %s187 = sand.u32 %s44, 1
        %s188 = smul.addr %s187, 6
        %s189 = scalar_lea.vmem [#allocation2], %s188
        // Predicated region
        $region29: #{tpu_custom_call.1} parent=27 // pred_check
          %p190 = pneg %p57
        $region30: #{tpu_custom_call.1} parent=27 // pred_check_branch
          %192 = sbr.rel (%p190) target = $region32
        $region31: #{tpu_custom_call.1} parent=27 // pred_region
          %194 = dma.done %s186, 96
        $region32: #{tpu_custom_call.1} parent=27 // pred_fallthru
          _
        %s195 = sand.u32 %s72, 1
        %s196 = scalar_lea.sflag [#allocation6], %s195
        %s197 = sand.u32 %s72, 1
        %s198 = smul.addr %s197, 8
        %s199 = scalar_lea.vmem [#allocation5], %s198
        // Predicated region
        $region33: #{tpu_custom_call.1} parent=27 // pred_check
          %p200 = pneg %p85
        $region34: #{tpu_custom_call.1} parent=27 // pred_check_branch
          %202 = sbr.rel (%p200) target = $region36
        $region35: #{tpu_custom_call.1} parent=27 // pred_region
          %204 = dma.done %s196, 128
        $region36: #{tpu_custom_call.1} parent=27 // pred_fallthru
          _
        %s205 = sand.u32 %s44, 1
        %s206 = scalar_lea.sflag [#allocation3], %s205
        %s207 = sand.u32 %s44, 1
        %s208 = smul.addr %s207, 6
        %s209 = scalar_lea.vmem [#allocation2], %s208
        %p210 = pneg %p57
        %p211 = pneg %p54
        %s212 = sand.u32 %s72, 1
        %s213 = scalar_lea.sflag [#allocation6], %s212
        %s214 = sand.u32 %s72, 1
        %s215 = smul.addr %s214, 8
        %s216 = scalar_lea.vmem [#allocation5], %s215
        %p217 = pneg %p85
        %p218 = pneg %p82
        %p219 = pneg %p113
        %p220 = pneg %p110
        %s221 = sand.u32 %s100, 1
        %s222 = scalar_lea.sflag [#allocation4], %s221
        %s223 = sand.u32 %s100, 1
        %s224 = smul.addr %s223, 6
        %s225 = scalar_lea.vmem [#allocation7], %s224
        %v226 = vld [vmem:[%s189] sm:$0x3]
        %v227 = vld [vmem:[%s189 + $0x2] sm:$0x3]
        %v228 = vld [vmem:[%s189 + $0x4] sm:$0x3]
        %v229 = vld [vmem:[%s199] sm:$0x3]
        %v230 = vld [vmem:[%s199 + $0x2] sm:$0x3]
        %v231 = vld [vmem:[%s199 + $0x4] sm:$0x3]
        %v232 = vld [vmem:[%s199 + $0x6] sm:$0x3]
        %v233 = vadd.f32 %v229, 1.0
        %v234 = vmul.f32 %v226, %v233
        %v235 = vmul.f32 %v227, %v233
        %v236 = vmul.f32 %v228, %v233
        %v237 = vsub.f32 %v234, %v230
        %v238 = vsub.f32 %v235, %v231
        %v239 = vsub.f32 %v236, %v232
        %240 = vst [vmem:[%s225] sm:$0x3] %v237
        %241 = vst [vmem:[%s225 + $0x2] sm:$0x3] %v238
        %242 = vst [vmem:[%s225 + $0x4] sm:$0x3] %v239
        %s243 = sand.u32 %s100, 1
        %s244 = scalar_lea.sflag [#allocation4], %s243
        %s245 = sand.u32 %s100, 1
        %s246 = smul.addr %s245, 6
        %s247 = scalar_lea.vmem [#allocation7], %s246
        // Predicated region
        $region37: #{tpu_custom_call.1} parent=27 // pred_check
          %p248 = pneg %p110
        $region38: #{tpu_custom_call.1} parent=27 // pred_check_branch
          %250 = sbr.rel (%p248) target = $region40
        $region39: #{tpu_custom_call.1} parent=27 // pred_region
          %252 = vsyncadd %s244, 0
          %s253 = smul.addr %s26, 3
          %s254 = sadd.s32 %s27, %s253
          %s255 = smul.addr %s254, 2
          %s256 = scalar_lea.hbm %s2, %s255
          %s257 = sshll.u32 %s247, 4
          %s258 = int_to_ptr.vmem [resolvable:$true] %s257
          %s259 = sshll.u32 %s256, 4
          %s260 = int_to_ptr.hbm [resolvable:$true] %s259
          %265 = dma.vmem_to_hbm [thread:$0]  %s258, 96, %s260, %s244, 32, 32, 2
        $region40: #{tpu_custom_call.1} parent=27 // pred_fallthru
          _
      $region28: #{tpu_custom_call.1} parent=5 // pred_fallthru
        _
      %p266 = scmp.le.s32.totalorder 2, %s17
      // Predicated region
      $region41: #{tpu_custom_call.1} parent=5 // pred_check
        %p267 = pneg %p266
      $region42: #{tpu_custom_call.1} parent=5 // pred_check_branch
        %269 = sbr.rel (%p267) target = $region44
      $region43: #{tpu_custom_call.1} parent=5 // pred_region
        %s270 = ssub.s32 %s17, 2
        // Predicated region
        $region45: #{tpu_custom_call.1} parent=43 // pred_check
          %p271 = pneg %p116
        $region46: #{tpu_custom_call.1} parent=43 // pred_check_branch
          %273 = sbr.rel (%p271) target = $region48
        $region47: #{tpu_custom_call.1} parent=43 // pred_region
          %s274 = sand.u32 %s101, 1
          %s275 = scalar_lea.sflag [#allocation4], %s274
          %s276 = sand.u32 %s101, 1
          %s277 = smul.addr %s276, 6
          %s278 = scalar_lea.vmem [#allocation7], %s277
          %280 = dma.done %s275, 96
        $region48: #{tpu_custom_call.1} parent=43 // pred_fallthru
          _
      $region44: #{tpu_custom_call.1} parent=5 // pred_fallthru
        _
    $region6: #{tpu_custom_call.1} parent=1 // loop_footer
      %s21 = sadd.s32 1, %s17
    $region7: #{tpu_custom_call.1} parent=1 // loop_footer_branch
      %16 = sbr.rel target = $region3
    $region8: #{tpu_custom_call.1} parent=1 // loop_exit
      _
    %281 = vsyncpa [#allocation3], 1
    %s282 = scalar_lea.sflag [#allocation3], 1
    %283 = vsyncpa %s282, 1
    %284 = vsyncpa [#allocation6], 1
    %s285 = scalar_lea.sflag [#allocation6], 1
    %286 = vsyncpa %s285, 1
    %287 = vsyncpa [#allocation4], 1
    %s288 = scalar_lea.sflag [#allocation4], 1
    %289 = vsyncpa %s288, 1

</llo_original>
